<compile_context>
chip_gen: v7x
topology: tpu7x:2x2x1
jax: 0.10.0
libtpu: 0.0.40
codegen_flags: <defaults>
</compile_context>

<pallas_src>
import functools

import jax
import jax.numpy as jnp
from jax import lax
from jax.experimental import pallas as pl
from jax.experimental.pallas import tpu as pltpu

EPS = 1e-5  # torch BatchNorm1d default eps


def _round_up(v, m):
  return (v + m - 1) // m * m


def _temporal_block_kernel(xa_ref, xb_ref, w1_ref, b1_ref, w2_ref, b2_ref,
                           *rest, K, d, pad, L1, L2, TL, D, has_ds, fuse_taps):
  if has_ds:
    wd_ref, bd_ref, o_ref = rest
  else:
    (o_ref,) = rest

  f32 = jnp.float32
  base = pl.program_id(1) * TL          # global row offset of this L tile

  # Main TL-row block plus a small Hr-row halo of the length-padded input.
  # xw row j <-> x_ext row (base + j).
  xw = jnp.concatenate([xa_ref[0], xb_ref[0]], axis=0)        # (TL+Hr, Cin_p)

  # ---- conv1 (+ folded BN1) + relu1 ; dropout1 is identity in eval mode ----
  H = TL + D                                                   # h1pad rows needed
  if fuse_taps:
    taps1 = jnp.concatenate([xw[k * d:k * d + H, :] for k in range(K)], axis=1)
    c1 = jnp.dot(taps1, w1_ref[...], preferred_element_type=f32)
  else:
    c1 = jnp.dot(xw[0:H, :], w1_ref[0], preferred_element_type=f32)
    for k in range(1, K):
      c1 = c1 + jnp.dot(xw[k * d:k * d + H, :], w1_ref[k],
                        preferred_element_type=f32)
  c1 = c1 + b1_ref[...]

  # h1pad row r is nonzero only for pad <= r < pad + L1 (narrow column mask).
  r1 = base + lax.broadcasted_iota(jnp.int32, (H, 1), 0)
  h1 = jnp.where((r1 >= pad) & (r1 < pad + L1), jnp.maximum(c1, 0.0), 0.0)
  h1 = h1.astype(w2_ref.dtype)

  # ---- conv2 (+ folded BN2) + relu2 ; dropout2 identity ----
  if fuse_taps:
    taps2 = jnp.concatenate([h1[k * d:k * d + TL, :] for k in range(K)], axis=1)
    c2 = jnp.dot(taps2, w2_ref[...], preferred_element_type=f32)
  else:
    c2 = jnp.dot(h1[0:TL, :], w2_ref[0], preferred_element_type=f32)
    for k in range(1, K):
      c2 = c2 + jnp.dot(h1[k * d:k * d + TL, :], w2_ref[k],
                        preferred_element_type=f32)
  c2 = c2 + b2_ref[...]

  # F.pad(out, (0, L - L2)): output rows >= L2 are zero before the residual.
  ro = base + lax.broadcasted_iota(jnp.int32, (TL, 1), 0)
  out = jnp.where(ro < L2, jnp.maximum(c2, 0.0), 0.0)

  # ---- residual: 1x1 downsample conv, or the input itself ----
  xr = xw[2 * pad:2 * pad + TL, :]                             # un-padded x rows
  if has_ds:
    resid = jnp.dot(xr, wd_ref[...], preferred_element_type=f32) + bd_ref[...]
  else:
    # TODO(synk): identity residual inherits the compute dtype of x (bf16 by
    # default) — pass compute_dtype=jnp.float32 if a full-precision skip
    # connection is required.
    resid = xr.astype(f32)

  o_ref[0] = jnp.maximum(out + resid, 0.0).astype(o_ref.dtype)


def temporal_block_forward(x_ncl, params, *, kernel_size, stride, dilation,
                           padding, compute_dtype=jnp.bfloat16,
                           out_dtype=jnp.float32, max_l_tile=1024,
                           fuse_taps=None, vmem_budget_bytes=40 * (1 << 20)):
  """x_ncl: (N, C_in, L), PyTorch layout.  Returns (N, C_out, L)."""
  assert stride == 1, "TODO(synk): stride != 1 not wired (TCN uses stride=1)"
  N, Cin, L = x_ncl.shape
  Cout, _, K = params["w1"].shape
  assert K == kernel_size
  D = dilation * (K - 1)
  L1 = L + 2 * padding - D
  L2 = L1 + 2 * padding - D
  assert L1 > 0 and 0 < L2 <= L, \
      "TODO(synk): cropping branch (conv output longer than residual)"

  LANE = 128
  Cin_p = _round_up(Cin, LANE)
  Cout_p = _round_up(Cout, LANE)
  has_ds = params.get("wd") is not None

  f32 = jnp.float32
  cdt = jnp.dtype(compute_dtype)
  odt = jnp.dtype(out_dtype)
  cbytes = cdt.itemsize
  obytes = odt.itemsize
  sub = 16 if cbytes == 2 else 8        # bf16 packs two rows per sublane

  # Conv strategy: fused im2col matmul (v6e/v7x 256-deep MXU) vs K accumulated
  # 128-deep dots (v5e: the 384-deep contraction buys nothing but the taps
  # buffer costs store/load traffic).
  if fuse_taps is None:
    fuse_taps = True
    try:
      kind = jax.devices()[0].device_kind.lower()
      if "v5 lite" in kind or "v5e" in kind or "v5lite" in kind:
        fuse_taps = False
    except Exception:
      pass

  # L tiling: halo of Hr rows (Hr >= 2*max(D, pad), multiple of `sub`, and
  # Hr | TL so the halo block index ((t+1)*TL)/Hr is exact).
  H2 = 2 * max(D, padding)
  Hr = max(_round_up(max(H2, 1), sub), sub)
  TL = _round_up(min(max(max_l_tile, 1), max(L, 1)), Hr)

  # Rough VMEM estimate (pipeline double-buffers + in-kernel temporaries);
  # shrink TL to fit the budget, then set the scoped limit explicitly.
  wbytes = (K * Cin_p * Cout_p + K * Cout_p * Cout_p
            + (Cin_p * Cout_p if has_ds else 0)) * cbytes

  def _est_vmem(tl):
    h = tl + D
    pipe = 2 * ((tl + Hr) * Cin_p * cbytes + tl * Cout_p * obytes) + 2 * wbytes
    tmp = (tl + Hr) * Cin_p * cbytes                           # xw
    if fuse_taps:
      tmp += h * K * Cin_p * cbytes + tl * K * Cout_p * cbytes  # taps1/taps2
    tmp += 2 * h * Cout_p * 4 + 3 * tl * Cout_p * 4            # c1/h1, c2/out/res
    return pipe + tmp

  while TL > Hr and _est_vmem(TL) > vmem_budget_bytes:
    TL = max(Hr, (TL // 2) // Hr * Hr)
  assert TL % Hr == 0
  T = -(-L // TL)                        # number of L tiles
  Lext = T * TL + Hr                     # padded length (small halo tail only)
  vmem_limit = int(min(64 << 20, max(32 << 20, _est_vmem(TL) * 3 // 2)))

  # ---- fold BatchNorm (running stats) + conv bias into conv weights ----
  s1 = params["g1"] * lax.rsqrt(params["v1"] + EPS)
  b1f = (params["b1"] - params["m1"]) * s1 + params["be1"]
  s2 = params["g2"] * lax.rsqrt(params["v2"] + EPS)
  b2f = (params["b2"] - params["m2"]) * s2 + params["be2"]

  # Conv weights: (Cout, Cin, K) -> (K, Cin, Cout), scale, pad channels to 128.
  w1 = jnp.transpose(params["w1"], (2, 1, 0)) * s1[None, None, :]
  w2 = jnp.transpose(params["w2"], (2, 1, 0)) * s2[None, None, :]
  w1 = jnp.pad(w1, ((0, 0), (0, Cin_p - Cin), (0, Cout_p - Cout)))
  w2 = jnp.pad(w2, ((0, 0), (0, Cout_p - Cout), (0, Cout_p - Cout)))
  if fuse_taps:                          # stack K taps into one im2col matrix
    w1 = w1.reshape(K * Cin_p, Cout_p)
    w2 = w2.reshape(K * Cout_p, Cout_p)
  w1 = w1.astype(cdt)
  w2 = w2.astype(cdt)
  b1p = jnp.pad(b1f, (0, Cout_p - Cout)).reshape(1, Cout_p).astype(f32)
  b2p = jnp.pad(b2f, (0, Cout_p - Cout)).reshape(1, Cout_p).astype(f32)

  if has_ds:
    wd = jnp.transpose(params["wd"][:, :, 0], (1, 0))           # (Cin, Cout)
    wd = jnp.pad(wd, ((0, Cin_p - Cin), (0, Cout_p - Cout))).astype(cdt)
    bd = jnp.pad(params["bd"], (0, Cout_p - Cout)).reshape(1, Cout_p).astype(f32)
  else:
    assert Cin == Cout

  # ---- layout plumbing: NCL -> NLC, pad lanes to 128, pad length ----
  # x_ext has 2*padding leading zero rows (conv1's own pad shifted in) and
  # trailing zeros up to T*TL + Hr so every halo window is in-bounds.
  x = jnp.transpose(x_ncl, (0, 2, 1)).astype(cdt)
  x = jnp.pad(x, ((0, 0),
                  (2 * padding, Lext - L - 2 * padding),
                  (0, Cin_p - Cin)))

  kernel = functools.partial(_temporal_block_kernel, K=K, d=dilation,
                             pad=padding, L1=L1, L2=L2, TL=TL, D=D,
                             has_ds=has_ds, fuse_taps=fuse_taps)

  def _const(shape):
    nd = len(shape)
    return pl.BlockSpec(shape, lambda n, t, _nd=nd: (0,) * _nd)

  blocks_per_tl = TL // Hr
  in_specs = [
      pl.BlockSpec((1, TL, Cin_p), lambda n, t: (n, t, 0)),                # tile
      pl.BlockSpec((1, Hr, Cin_p),
                   lambda n, t: (n, (t + 1) * blocks_per_tl, 0)),          # halo
      _const(w1.shape), _const((1, Cout_p)),
      _const(w2.shape), _const((1, Cout_p)),
  ]
  args = [x, x, w1, b1p, w2, b2p]
  if has_ds:
    in_specs += [_const((Cin_p, Cout_p)), _const((1, Cout_p))]
    args += [wd, bd]

  out_nlc = pl.pallas_call(
      kernel,
      out_shape=jax.ShapeDtypeStruct((N, T * TL, Cout_p), odt),
      grid_spec=pltpu.PrefetchScalarGridSpec(
          num_scalar_prefetch=0,
          grid=(N, T),
          in_specs=in_specs,
          out_specs=pl.BlockSpec((1, TL, Cout_p), lambda n, t: (n, t, 0))),
      compiler_params=pltpu.CompilerParams(
          dimension_semantics=("parallel", "parallel"),
          vmem_limit_bytes=vmem_limit),
  )(*args)

  return jnp.transpose(out_nlc[:, :L, :Cout], (0, 2, 1))


# ---------------- pure-JAX reference (for correctness check) ----------------
def _ref_forward(x, params, *, stride, dilation, padding):
  def conv1d(x, w, b, pad, dil):
    y = lax.conv_general_dilated(x, w, window_strides=(stride,),
                                 padding=[(pad, pad)], rhs_dilation=(dil,),
                                 dimension_numbers=("NCH", "OIH", "NCH"))
    return y + b[None, :, None]

  def bn(y, g, be, m, v):
    return ((y - m[None, :, None]) * lax.rsqrt(v + EPS)[None, :, None]
            * g[None, :, None] + be[None, :, None])

  out = jax.nn.relu(bn(conv1d(x, params["w1"], params["b1"], padding, dilation),
                       params["g1"], params["be1"], params["m1"], params["v1"]))
  out = jax.nn.relu(bn(conv1d(out, params["w2"], params["b2"], padding, dilation),
                       params["g2"], params["be2"], params["m2"], params["v2"]))
  if params.get("wd") is not None:
    resid = conv1d(x, params["wd"], params["bd"], 0, 1)
  else:
    resid = x
  if out.shape[2] != resid.shape[2]:
    out = jnp.pad(out, ((0, 0), (0, 0), (0, resid.shape[2] - out.shape[2])))
  return jax.nn.relu(out + resid)


def _make_params(key, Cin, Cout, K, with_ds):
  ks = jax.random.split(key, 14)
  f32 = jnp.float32
  p = dict(
      w1=0.3 * jax.random.normal(ks[0], (Cout, Cin, K), f32),
      b1=0.1 * jax.random.normal(ks[1], (Cout,), f32),
      g1=1.0 + 0.1 * jax.random.normal(ks[2], (Cout,), f32),
      be1=0.1 * jax.random.normal(ks[3], (Cout,), f32),
      m1=0.05 * jax.random.normal(ks[4], (Cout,), f32),
      v1=1.0 + 0.2 * jax.random.uniform(ks[5], (Cout,), f32),
      w2=0.3 * jax.random.normal(ks[6], (Cout, Cout, K), f32),
      b2=0.1 * jax.random.normal(ks[7], (Cout,), f32),
      g2=1.0 + 0.1 * jax.random.normal(ks[8], (Cout,), f32),
      be2=0.1 * jax.random.normal(ks[9], (Cout,), f32),
      m2=0.05 * jax.random.normal(ks[10], (Cout,), f32),
      v2=1.0 + 0.2 * jax.random.uniform(ks[11], (Cout,), f32),
  )
  if with_ds:
    p["wd"] = 0.3 * jax.random.normal(ks[12], (Cout, Cin, 1), f32)
    p["bd"] = 0.1 * jax.random.normal(ks[13], (Cout,), f32)
  else:
    p["wd"] = None
    p["bd"] = None
  return p


if __name__ == "__main__":
  key = jax.random.PRNGKey(0)
  kp1, kp3, kp6, kx1, kx3, kx6 = jax.random.split(key, 6)

  # Case 1: downsample path, conv output shorter than residual (F.pad branch),
  # f32 compute, fused im2col.
  N, Cin, Cout, L = 2, 4, 8, 16
  K, stride, dilation, padding = 3, 1, 2, 1
  p1 = _make_params(kp1, Cin, Cout, K, with_ds=True)
  x1 = jax.random.normal(kx1, (N, Cin, L), jnp.float32)
  ref1 = _ref_forward(x1, p1, stride=stride, dilation=dilation, padding=padding)

  out1 = jax.block_until_ready(temporal_block_forward(
      x1, p1, kernel_size=K, stride=stride, dilation=dilation, padding=padding,
      compute_dtype=jnp.float32, fuse_taps=True))
  assert out1.shape == ref1.shape, (out1.shape, ref1.shape)
  assert jnp.allclose(out1, ref1, atol=1e-4, rtol=1e-4), \
      float(jnp.max(jnp.abs(out1 - ref1)))

  # Case 2: same problem, force multiple L tiles (exercises small-halo block
  # + masking across tile boundaries).
  out2 = jax.block_until_ready(temporal_block_forward(
      x1, p1, kernel_size=K, stride=stride, dilation=dilation, padding=padding,
      compute_dtype=jnp.float32, fuse_taps=True, max_l_tile=8))
  assert jnp.allclose(out2, ref1, atol=1e-4, rtol=1e-4), \
      float(jnp.max(jnp.abs(out2 - ref1)))

  # Case 3: identity residual (in_channels == out_channels, no downsample).
  p3 = _make_params(kp3, Cout, Cout, K, with_ds=False)
  x3 = jax.random.normal(kx3, (N, Cout, L), jnp.float32)
  ref3 = _ref_forward(x3, p3, stride=stride, dilation=dilation, padding=2)
  out3 = jax.block_until_ready(temporal_block_forward(
      x3, p3, kernel_size=K, stride=stride, dilation=dilation, padding=2,
      compute_dtype=jnp.float32, fuse_taps=True))
  assert jnp.allclose(out3, ref3, atol=1e-4, rtol=1e-4), \
      float(jnp.max(jnp.abs(out3 - ref3)))

  # Case 4: default bf16 MXU inputs (f32 accumulation) — looser tolerance.
  out4 = jax.block_until_ready(temporal_block_forward(
      x1, p1, kernel_size=K, stride=stride, dilation=dilation, padding=padding))
  assert jnp.allclose(out4, ref1, atol=5e-2, rtol=5e-2), \
      float(jnp.max(jnp.abs(out4 - ref1)))

  # Case 5: v5e-style K accumulated dots (no im2col concat), f32, tight tol.
  out5 = jax.block_until_ready(temporal_block_forward(
      x1, p1, kernel_size=K, stride=stride, dilation=dilation, padding=padding,
      compute_dtype=jnp.float32, fuse_taps=False))
  assert jnp.allclose(out5, ref1, atol=1e-4, rtol=1e-4), \
      float(jnp.max(jnp.abs(out5 - ref1)))

  # Case 6: bf16, multi-tile, identity residual, larger dilation.
  N6, C6, L6, K6, d6, pad6 = 1, 8, 40, 3, 4, 4
  p6 = _make_params(kp6, C6, C6, K6, with_ds=False)
  x6 = jax.random.normal(kx6, (N6, C6, L6), jnp.float32)
  ref6 = _ref_forward(x6, p6, stride=1, dilation=d6, padding=pad6)
  out6 = jax.block_until_ready(temporal_block_forward(
      x6, p6, kernel_size=K6, stride=1, dilation=d6, padding=pad6,
      max_l_tile=16))
  assert jnp.allclose(out6, ref6, atol=5e-2, rtol=5e-2), \
      float(jnp.max(jnp.abs(out6 - ref6)))

  print("KERNEL_OK")
</pallas_src>

<mosaic_0001>
module attributes {stable_mosaic.version = 11 : i64} {
  func.func @_temporal_block_kernel(%arg0: i32, %arg1: i32, %arg2: memref<1x16x128xf32, #tpu.memory_space<vmem>>, %arg3: memref<1x8x128xf32, #tpu.memory_space<vmem>>, %arg4: memref<384x128xf32, #tpu.memory_space<vmem>>, %arg5: memref<1x128xf32, #tpu.memory_space<vmem>>, %arg6: memref<384x128xf32, #tpu.memory_space<vmem>>, %arg7: memref<1x128xf32, #tpu.memory_space<vmem>>, %arg8: memref<128x128xf32, #tpu.memory_space<vmem>>, %arg9: memref<1x128xf32, #tpu.memory_space<vmem>>, %arg10: memref<1x16x128xf32, #tpu.memory_space<vmem>>) attributes {dimension_semantics = [#tpu.dimension_semantics<parallel>, #tpu.dimension_semantics<parallel>], iteration_bounds = array<i64: 2, 1>, scalar_prefetch = 0 : i64, scratch_operands = 0 : i64, tpu.core_type = #tpu.core_type<tc>, window_params = [{transform_indices = @transform_0, window_bounds = array<i64: 1, 16, 128>}, {transform_indices = @transform_1, window_bounds = array<i64: 1, 8, 128>}, {pipeline_mode = #tpu.pipeline_mode<synchronous>, transform_indices = @transform_2, window_bounds = array<i64: 384, 128>}, {pipeline_mode = #tpu.pipeline_mode<synchronous>, transform_indices = @transform_3, window_bounds = array<i64: 1, 128>}, {pipeline_mode = #tpu.pipeline_mode<synchronous>, transform_indices = @transform_4, window_bounds = array<i64: 384, 128>}, {pipeline_mode = #tpu.pipeline_mode<synchronous>, transform_indices = @transform_5, window_bounds = array<i64: 1, 128>}, {pipeline_mode = #tpu.pipeline_mode<synchronous>, transform_indices = @transform_6, window_bounds = array<i64: 128, 128>}, {pipeline_mode = #tpu.pipeline_mode<synchronous>, transform_indices = @transform_7, window_bounds = array<i64: 1, 128>}, {transform_indices = @transform_8, window_bounds = array<i64: 1, 16, 128>}]} {
    %c16_i32 = arith.constant 16 : i32
    %0 = arith.muli %arg1, %c16_i32 : i32
    %c0 = arith.constant 0 : index
    %c0_0 = arith.constant 0 : index
    %c0_1 = arith.constant 0 : index
    %1 = vector.load %arg2[%c0, %c0_0, %c0_1] : memref<1x16x128xf32, #tpu.memory_space<vmem>>, vector<1x16x128xf32>
    %2 = vector.shape_cast %1 : vector<1x16x128xf32> to vector<16x128xf32>
    %c0_2 = arith.constant 0 : index
    %c0_3 = arith.constant 0 : index
    %c0_4 = arith.constant 0 : index
    %3 = vector.load %arg3[%c0_2, %c0_3, %c0_4] : memref<1x8x128xf32, #tpu.memory_space<vmem>>, vector<1x8x128xf32>
    %4 = vector.shape_cast %3 : vector<1x8x128xf32> to vector<8x128xf32>
    %5 = tpu.concatenate %2, %4 in 0 : vector<16x128xf32>, vector<8x128xf32> -> vector<24x128xf32>
    %6 = vector.extract_strided_slice %5 {offsets = [0, 0], sizes = [20, 128], strides = [1, 1]} : vector<24x128xf32> to vector<20x128xf32>
    %7 = vector.extract_strided_slice %5 {offsets = [2, 0], sizes = [20, 128], strides = [1, 1]} : vector<24x128xf32> to vector<20x128xf32>
    %8 = vector.extract_strided_slice %5 {offsets = [4, 0], sizes = [20, 128], strides = [1, 1]} : vector<24x128xf32> to vector<20x128xf32>
    %9 = tpu.concatenate %6, %7, %8 in 1 : vector<20x128xf32>, vector<20x128xf32>, vector<20x128xf32> -> vector<20x384xf32>
    %c0_5 = arith.constant 0 : index
    %c0_6 = arith.constant 0 : index
    %10 = vector.load %arg4[%c0_5, %c0_6] : memref<384x128xf32, #tpu.memory_space<vmem>>, vector<384x128xf32>
    %cst = arith.constant dense<0.000000e+00> : vector<20x128xf32>
    %11 = tpu.matmul %9, %10, %cst {dimension_numbers = #tpu.dot_dimension_numbers<[1], [0], [0], [1], [0, 0, 1, 1], [], []>} : vector<20x384xf32>, vector<384x128xf32>, vector<20x128xf32> -> vector<20x128xf32>
    %c0_7 = arith.constant 0 : index
    %c0_8 = arith.constant 0 : index
    %12 = vector.load %arg5[%c0_7, %c0_8] : memref<1x128xf32, #tpu.memory_space<vmem>>, vector<1x128xf32>
    %13 = vector.broadcast %12 : vector<1x128xf32> to vector<20x128xf32>
    %14 = arith.addf %11, %13 : vector<20x128xf32>
    %15 = tpu.iota {dimensions = array<i32: 0>} : vector<20x1xi32>
    %16 = vector.broadcast %0 : i32 to vector<20x1xi32>
    %17 = arith.addi %16, %15 : vector<20x1xi32>
    %c1_i32 = arith.constant 1 : i32
    %18 = vector.broadcast %c1_i32 : i32 to vector<20x1xi32>
    %19 = arith.cmpi sge, %17, %18 : vector<20x1xi32>
    %c15_i32 = arith.constant 15 : i32
    %20 = vector.broadcast %c15_i32 : i32 to vector<20x1xi32>
    %21 = arith.cmpi slt, %17, %20 : vector<20x1xi32>
    %22 = arith.andi %19, %21 : vector<20x1xi1>
    %cst_9 = arith.constant 0.000000e+00 : f32
    %23 = vector.broadcast %cst_9 : f32 to vector<20x128xf32>
    %24 = arith.maximumf %14, %23 : vector<20x128xf32>
    %cst_10 = arith.constant 0.000000e+00 : f32
    %25 = vector.shape_cast %22 : vector<20x1xi1> to vector<20x1xi1>
    %26 = vector.broadcast %25 : vector<20x1xi1> to vector<20x128xi1>
    %27 = vector.broadcast %cst_10 : f32 to vector<20x128xf32>
    %28 = arith.select %26, %24, %27 : vector<20x128xi1>, vector<20x128xf32>
    %29 = vector.extract_strided_slice %28 {offsets = [0, 0], sizes = [16, 128], strides = [1, 1]} : vector<20x128xf32> to vector<16x128xf32>
    %30 = vector.extract_strided_slice %28 {offsets = [2, 0], sizes = [16, 128], strides = [1, 1]} : vector<20x128xf32> to vector<16x128xf32>
    %31 = vector.extract_strided_slice %28 {offsets = [4, 0], sizes = [16, 128], strides = [1, 1]} : vector<20x128xf32> to vector<16x128xf32>
    %32 = tpu.concatenate %29, %30, %31 in 1 : vector<16x128xf32>, vector<16x128xf32>, vector<16x128xf32> -> vector<16x384xf32>
    %c0_11 = arith.constant 0 : index
    %c0_12 = arith.constant 0 : index
    %33 = vector.load %arg6[%c0_11, %c0_12] : memref<384x128xf32, #tpu.memory_space<vmem>>, vector<384x128xf32>
    %cst_13 = arith.constant dense<0.000000e+00> : vector<16x128xf32>
    %34 = tpu.matmul %32, %33, %cst_13 {dimension_numbers = #tpu.dot_dimension_numbers<[1], [0], [0], [1], [0, 0, 1, 1], [], []>} : vector<16x384xf32>, vector<384x128xf32>, vector<16x128xf32> -> vector<16x128xf32>
    %c0_14 = arith.constant 0 : index
    %c0_15 = arith.constant 0 : index
    %35 = vector.load %arg7[%c0_14, %c0_15] : memref<1x128xf32, #tpu.memory_space<vmem>>, vector<1x128xf32>
    %36 = vector.broadcast %35 : vector<1x128xf32> to vector<16x128xf32>
    %37 = arith.addf %34, %36 : vector<16x128xf32>
    %38 = tpu.iota {dimensions = array<i32: 0>} : vector<16x1xi32>
    %39 = vector.broadcast %0 : i32 to vector<16x1xi32>
    %40 = arith.addi %39, %38 : vector<16x1xi32>
    %c12_i32 = arith.constant 12 : i32
    %41 = vector.broadcast %c12_i32 : i32 to vector<16x1xi32>
    %42 = arith.cmpi slt, %40, %41 : vector<16x1xi32>
    %cst_16 = arith.constant 0.000000e+00 : f32
    %43 = vector.broadcast %cst_16 : f32 to vector<16x128xf32>
    %44 = arith.maximumf %37, %43 : vector<16x128xf32>
    %cst_17 = arith.constant 0.000000e+00 : f32
    %45 = vector.shape_cast %42 : vector<16x1xi1> to vector<16x1xi1>
    %46 = vector.broadcast %45 : vector<16x1xi1> to vector<16x128xi1>
    %47 = vector.broadcast %cst_17 : f32 to vector<16x128xf32>
    %48 = arith.select %46, %44, %47 : vector<16x128xi1>, vector<16x128xf32>
    %49 = vector.extract_strided_slice %5 {offsets = [2, 0], sizes = [16, 128], strides = [1, 1]} : vector<24x128xf32> to vector<16x128xf32>
    %c0_18 = arith.constant 0 : index
    %c0_19 = arith.constant 0 : index
    %50 = vector.load %arg8[%c0_18, %c0_19] : memref<128x128xf32, #tpu.memory_space<vmem>>, vector<128x128xf32>
    %cst_20 = arith.constant dense<0.000000e+00> : vector<16x128xf32>
    %51 = tpu.matmul %49, %50, %cst_20 {dimension_numbers = #tpu.dot_dimension_numbers<[1], [0], [0], [1], [0, 0, 1, 1], [], []>} : vector<16x128xf32>, vector<128x128xf32>, vector<16x128xf32> -> vector<16x128xf32>
    %c0_21 = arith.constant 0 : index
    %c0_22 = arith.constant 0 : index
    %52 = vector.load %arg9[%c0_21, %c0_22] : memref<1x128xf32, #tpu.memory_space<vmem>>, vector<1x128xf32>
    %53 = vector.broadcast %52 : vector<1x128xf32> to vector<16x128xf32>
    %54 = arith.addf %51, %53 : vector<16x128xf32>
    %55 = arith.addf %48, %54 : vector<16x128xf32>
    %cst_23 = arith.constant 0.000000e+00 : f32
    %56 = vector.broadcast %cst_23 : f32 to vector<16x128xf32>
    %57 = arith.maximumf %55, %56 : vector<16x128xf32>
    %c0_24 = arith.constant 0 : index
    %c0_25 = arith.constant 0 : index
    %c0_26 = arith.constant 0 : index
    %58 = vector.load %arg10[%c0_24, %c0_25, %c0_26] : memref<1x16x128xf32, #tpu.memory_space<vmem>>, vector<1x16x128xf32>
    %59 = vector.shape_cast %58 : vector<1x16x128xf32> to vector<16x128xf32>
    %60 = vector.shape_cast %57 : vector<16x128xf32> to vector<1x16x128xf32>
    tpu.vector_store %arg10[%c0_24, %c0_25, %c0_26], %60 {strides = array<i32>} : memref<1x16x128xf32, #tpu.memory_space<vmem>>, vector<1x16x128xf32>,
    return
  }
  func.func @transform_0(%arg0: i32, %arg1: i32) -> (i32, i32, i32) {
    %c0_i32 = arith.constant 0 : i32
    %c0_i32_0 = arith.constant 0 : i32
    return %arg0, %arg1, %c0_i32 : i32, i32, i32
  }
  func.func @transform_1(%arg0: i32, %arg1: i32) -> (i32, i32, i32) {
    %c1_i32 = arith.constant 1 : i32
    %0 = arith.addi %arg1, %c1_i32 : i32
    %c2_i32 = arith.constant 2 : i32
    %1 = arith.muli %0, %c2_i32 : i32
    %c0_i32 = arith.constant 0 : i32
    %c0_i32_0 = arith.constant 0 : i32
    return %arg0, %1, %c0_i32 : i32, i32, i32
  }
  func.func @transform_2(%arg0: i32, %arg1: i32) -> (i32, i32) {
    %c0_i32 = arith.constant 0 : i32
    %c0_i32_0 = arith.constant 0 : i32
    %c0_i32_1 = arith.constant 0 : i32
    return %c0_i32, %c0_i32_0 : i32, i32
  }
  func.func @transform_3(%arg0: i32, %arg1: i32) -> (i32, i32) {
    %c0_i32 = arith.constant 0 : i32
    %c0_i32_0 = arith.constant 0 : i32
    %c0_i32_1 = arith.constant 0 : i32
    return %c0_i32, %c0_i32_0 : i32, i32
  }
  func.func @transform_4(%arg0: i32, %arg1: i32) -> (i32, i32) {
    %c0_i32 = arith.constant 0 : i32
    %c0_i32_0 = arith.constant 0 : i32
    %c0_i32_1 = arith.constant 0 : i32
    return %c0_i32, %c0_i32_0 : i32, i32
  }
  func.func @transform_5(%arg0: i32, %arg1: i32) -> (i32, i32) {
    %c0_i32 = arith.constant 0 : i32
    %c0_i32_0 = arith.constant 0 : i32
    %c0_i32_1 = arith.constant 0 : i32
    return %c0_i32, %c0_i32_0 : i32, i32
  }
  func.func @transform_6(%arg0: i32, %arg1: i32) -> (i32, i32) {
    %c0_i32 = arith.constant 0 : i32
    %c0_i32_0 = arith.constant 0 : i32
    %c0_i32_1 = arith.constant 0 : i32
    return %c0_i32, %c0_i32_0 : i32, i32
  }
  func.func @transform_7(%arg0: i32, %arg1: i32) -> (i32, i32) {
    %c0_i32 = arith.constant 0 : i32
    %c0_i32_0 = arith.constant 0 : i32
    %c0_i32_1 = arith.constant 0 : i32
    return %c0_i32, %c0_i32_0 : i32, i32
  }
  func.func @transform_8(%arg0: i32, %arg1: i32) -> (i32, i32, i32) {
    %c0_i32 = arith.constant 0 : i32
    %c0_i32_0 = arith.constant 0 : i32
    return %arg0, %arg1, %c0_i32 : i32, i32, i32
  }
}

</mosaic_0001>

<llo_original>
// kernel: tpu_custom_call.1
$region0: #{tpu_custom_call.1}
  #allocation0 [shape = 'u32[]', space=smem, size = 0x4, offset = 0x4, fixed_abs, tag = 'smem constant byte address 0x4 - core index']
  #allocation1 [shape = 'u32[144,128]{1,0:T(1,128)}', space=vmem, size = 0x12000, scoped, tag = 'internal scratch']
  %s0 = inlined_call_operand.hbm [shape: f32[2,24,128], index: 0, kind: input, shape index: {}]
  %s1 = inlined_call_operand.hbm [shape: f32[2,24,128], index: 1, kind: input, shape index: {}]
  %s2 = inlined_call_operand.hbm [shape: f32[384,128], index: 2, kind: input, shape index: {}]
  %s3 = inlined_call_operand.vmem [shape: f32[1,128], index: 3, kind: input, shape index: {}]
  %s4 = inlined_call_operand.hbm [shape: f32[384,128], index: 4, kind: input, shape index: {}]
  %s5 = inlined_call_operand.vmem [shape: f32[1,128], index: 5, kind: input, shape index: {}]
  %s6 = inlined_call_operand.hbm [shape: f32[128,128], index: 6, kind: input, shape index: {}]
  %s7 = inlined_call_operand.vmem [shape: f32[1,128], index: 7, kind: input, shape index: {}]
  %s8 = inlined_call_operand.hbm [shape: f32[2,16,128], index: 8, kind: output, shape index: {}]
  %s9 = sld [smem:[#allocation0]]
  $region85: #{tpu_custom_call.1} parent=0
    _
  %s11 = ssub.s32 1, %s9
  %s12 = scalar_select 0, %s11, %s9
  $region1: #{tpu_custom_call.1} parent=0
    #allocation2 [shape = 'u8[16384]{0}', space=vmem, size = 0x4000, scoped, tag = 'input window, operand 0']
    #allocation3 [shape = 's32[2]{0}', space=sflag, size = 0x8, scoped, tag = 'scoped memory for tpu_custom_call.1']
    #allocation4 [shape = 's32[2]{0}', space=sflag, size = 0x8, scoped, tag = 'scoped memory for tpu_custom_call.1']
    #allocation5 [shape = 'u8[8192]{0}', space=vmem, size = 0x2000, scoped, tag = 'input window, operand 1']
    #allocation6 [shape = 's32[2]{0}', space=sflag, size = 0x8, scoped, tag = 'scoped memory for tpu_custom_call.1']
    #allocation7 [shape = 'u8[196608]{0}', space=vmem, size = 0x30000, scoped, tag = 'input window, operand 2, single buffered']
    #allocation8 [shape = 'u8[196608]{0}', space=vmem, size = 0x30000, scoped, tag = 'input window, operand 4, single buffered']
    #allocation9 [shape = 's32[1]{0}', space=sflag, size = 0x4, scoped, tag = 'scoped memory for tpu_custom_call.1']
    #allocation10 [shape = 'u8[65536]{0}', space=vmem, size = 0x10000, scoped, tag = 'input window, operand 6, single buffered']
    #allocation11 [shape = 'u8[16384]{0}', space=vmem, size = 0x4000, scoped, tag = 'output window, operand 0']
    %13 = vsyncpa [#allocation3], 0
    %s14 = scalar_lea.sflag [#allocation3], 1
    %15 = vsyncpa %s14, 0
    %16 = vsyncpa [#allocation6], 0
    %s17 = scalar_lea.sflag [#allocation6], 1
    %18 = vsyncpa %s17, 0
    %19 = vsyncpa [#allocation9], 0
    %20 = vsyncpa [#allocation4], 0
    %s21 = scalar_lea.sflag [#allocation4], 1
    %22 = vsyncpa %s21, 0
    loop: start=0, step=1, limit=4
    $region2: #{tpu_custom_call.1} parent=1 // loop_pre_header
      _
    $region3: #{tpu_custom_call.1} parent=1 // loop_header
      %s24 = sphi 0, %s28
      %p25 = scmp.ge.s32.totalorder %s24, 4
      %s31 = sphi 0, %s43
      %s32 = sphi 0, %s39
      %s33 = sphi 0, %s31
      %s34 = sphi 0, %s32
      %s35 = sphi 0, %s33
      %s36 = sphi 0, %s34
      %s48 = sphi 0, %s50
      %s51 = sphi 0, %s48
      %s52 = sphi 0, %s51
      %s68 = sphi 0, %s52
      %s80 = sphi 0, %s82
      %s83 = sphi 0, %s80
      %s84 = sphi 0, %s83
      %s100 = sphi 0, %s84
      %s104 = sphi 0, %s104
      %s106 = sphi 0, %s104
      %s107 = sphi 0, %s106
      %s121 = sphi 0, %s107
      %s125 = sphi 0, %s125
      %s127 = sphi 0, %s125
      %s128 = sphi 0, %s127
      %s142 = sphi 0, %s128
      %s146 = sphi 0, %s146
      %s148 = sphi 0, %s146
      %s149 = sphi 0, %s148
      %s163 = sphi 0, %s149
      %s167 = sphi 0, %s167
      %s169 = sphi 0, %s167
      %s170 = sphi 0, %s169
      %s184 = sphi 0, %s170
      %s188 = sphi 0, %s188
      %s190 = sphi 0, %s188
      %s191 = sphi 0, %s190
      %s205 = sphi 0, %s191
      %s209 = sphi 0, %s209
      %s211 = sphi 0, %s209
      %s212 = sphi 0, %s211
      %s226 = sphi 0, %s212
      %s234 = sphi 0, %s236
      %s237 = sphi 0, %s234
      %s238 = sphi 0, %s237
      %s254 = sphi 0, %s238
    $region4: #{tpu_custom_call.1} parent=1 // loop_header_branch
      %27 = sbr.rel (%p25) target = $region8
    $region5: #{tpu_custom_call.1} parent=1 // loop_body
      %s29 = ssub.s32 %s24, 1
      %s30 = ssub.s32 %s24, 2
      %s37 = sadd.s32 1, %s32
      %p38 = scmp.ge.s32.totalorder %s37, 1
      %s39 = scalar_select %p38, 0, %s37
      %s40 = sadd.s32 1, %s31
      %s41 = scalar_select %p38, %s40, %s31
      %p42 = scmp.ge.s32.totalorder %s41, 2
      %s43 = scalar_select %p42, 0, %s41
      %s44 = ssub.s32 %s31, %s43
      %s45 = ssub.s32 %s32, %s39
      %s46 = sor.u32 %s44, %s45
      %p47 = scmp.eq.s32.totalorder %s46, 0
      %s49 = sadd.s32 %s48, 1
      %s50 = scalar_select %p47, %s48, %s49
      %p53 = pneg %p47
      %p54 = scmp.eq.s32.totalorder %s24, 1
      %p55 = por %p53, %p54
      %p56 = scmp.ne.s32.totalorder %s48, %s51
      %p57 = scmp.eq.s32.totalorder %s24, 0
      %p58 = por %p56, %p57
      %p59 = scmp.ne.s32.totalorder %s48, %s51
      %p60 = scmp.eq.s32.totalorder %s29, 1
      %p61 = por %p59, %p60
      %p62 = scmp.ne.s32.totalorder %s51, %s52
      %p63 = scmp.eq.s32.totalorder %s29, 0
      %p64 = por %p62, %p63
      %p65 = scmp.ne.s32.totalorder %s51, %s52
      %p66 = scmp.eq.s32.totalorder %s30, 1
      %p67 = por %p65, %p66
      %p69 = scmp.ne.s32.totalorder %s52, %s68
      %p70 = scmp.eq.s32.totalorder %s30, 0
      %p71 = por %p69, %p70
      %s72 = sadd.s32 %s32, 1
      %s73 = smul.u32 %s72, 2
      %s74 = sadd.s32 %s39, 1
      %s75 = smul.u32 %s74, 2
      %s76 = ssub.s32 %s31, %s43
      %s77 = ssub.s32 %s73, %s75
      %s78 = sor.u32 %s76, %s77
      %p79 = scmp.eq.s32.totalorder %s78, 0
      %s81 = sadd.s32 %s80, 1
      %s82 = scalar_select %p79, %s80, %s81
      %p85 = pneg %p79
      %p86 = scmp.eq.s32.totalorder %s24, 1
      %p87 = por %p85, %p86
      %p88 = scmp.ne.s32.totalorder %s80, %s83
      %p89 = scmp.eq.s32.totalorder %s24, 0
      %p90 = por %p88, %p89
      %p91 = scmp.ne.s32.totalorder %s80, %s83
      %p92 = scmp.eq.s32.totalorder %s29, 1
      %p93 = por %p91, %p92
      %p94 = scmp.ne.s32.totalorder %s83, %s84
      %p95 = scmp.eq.s32.totalorder %s29, 0
      %p96 = por %p94, %p95
      %p97 = scmp.ne.s32.totalorder %s83, %s84
      %p98 = scmp.eq.s32.totalorder %s30, 1
      %p99 = por %p97, %p98
      %p101 = scmp.ne.s32.totalorder %s84, %s100
      %p102 = scmp.eq.s32.totalorder %s30, 0
      %p103 = por %p101, %p102
      %s105 = sadd.s32 %s104, 1
      %p108 = scmp.eq.s32.totalorder %s24, 1
      %p109 = scmp.ne.s32.totalorder %s104, %s106
      %p110 = scmp.eq.s32.totalorder %s24, 0
      %p111 = por %p109, %p110
      %p112 = scmp.ne.s32.totalorder %s104, %s106
      %p113 = scmp.eq.s32.totalorder %s29, 1
      %p114 = por %p112, %p113
      %p115 = scmp.ne.s32.totalorder %s106, %s107
      %p116 = scmp.eq.s32.totalorder %s29, 0
      %p117 = por %p115, %p116
      %p118 = scmp.ne.s32.totalorder %s106, %s107
      %p119 = scmp.eq.s32.totalorder %s30, 1
      %p120 = por %p118, %p119
      %p122 = scmp.ne.s32.totalorder %s107, %s121
      %p123 = scmp.eq.s32.totalorder %s30, 0
      %p124 = por %p122, %p123
      %s126 = sadd.s32 %s125, 1
      %p129 = scmp.eq.s32.totalorder %s24, 1
      %p130 = scmp.ne.s32.totalorder %s125, %s127
      %p131 = scmp.eq.s32.totalorder %s24, 0
      %p132 = por %p130, %p131
      %p133 = scmp.ne.s32.totalorder %s125, %s127
      %p134 = scmp.eq.s32.totalorder %s29, 1
      %p135 = por %p133, %p134
      %p136 = scmp.ne.s32.totalorder %s127, %s128
      %p137 = scmp.eq.s32.totalorder %s29, 0
      %p138 = por %p136, %p137
      %p139 = scmp.ne.s32.totalorder %s127, %s128
      %p140 = scmp.eq.s32.totalorder %s30, 1
      %p141 = por %p139, %p140
      %p143 = scmp.ne.s32.totalorder %s128, %s142
      %p144 = scmp.eq.s32.totalorder %s30, 0
      %p145 = por %p143, %p144
      %s147 = sadd.s32 %s146, 1
      %p150 = scmp.eq.s32.totalorder %s24, 1
      %p151 = scmp.ne.s32.totalorder %s146, %s148
      %p152 = scmp.eq.s32.totalorder %s24, 0
      %p153 = por %p151, %p152
      %p154 = scmp.ne.s32.totalorder %s146, %s148
      %p155 = scmp.eq.s32.totalorder %s29, 1
      %p156 = por %p154, %p155
      %p157 = scmp.ne.s32.totalorder %s148, %s149
      %p158 = scmp.eq.s32.totalorder %s29, 0
      %p159 = por %p157, %p158
      %p160 = scmp.ne.s32.totalorder %s148, %s149
      %p161 = scmp.eq.s32.totalorder %s30, 1
      %p162 = por %p160, %p161
      %p164 = scmp.ne.s32.totalorder %s149, %s163
      %p165 = scmp.eq.s32.totalorder %s30, 0
      %p166 = por %p164, %p165
      %s168 = sadd.s32 %s167, 1
      %p171 = scmp.eq.s32.totalorder %s24, 1
      %p172 = scmp.ne.s32.totalorder %s167, %s169
      %p173 = scmp.eq.s32.totalorder %s24, 0
      %p174 = por %p172, %p173
      %p175 = scmp.ne.s32.totalorder %s167, %s169
      %p176 = scmp.eq.s32.totalorder %s29, 1
      %p177 = por %p175, %p176
      %p178 = scmp.ne.s32.totalorder %s169, %s170
      %p179 = scmp.eq.s32.totalorder %s29, 0
      %p180 = por %p178, %p179
      %p181 = scmp.ne.s32.totalorder %s169, %s170
      %p182 = scmp.eq.s32.totalorder %s30, 1
      %p183 = por %p181, %p182
      %p185 = scmp.ne.s32.totalorder %s170, %s184
      %p186 = scmp.eq.s32.totalorder %s30, 0
      %p187 = por %p185, %p186
      %s189 = sadd.s32 %s188, 1
      %p192 = scmp.eq.s32.totalorder %s24, 1
      %p193 = scmp.ne.s32.totalorder %s188, %s190
      %p194 = scmp.eq.s32.totalorder %s24, 0
      %p195 = por %p193, %p194
      %p196 = scmp.ne.s32.totalorder %s188, %s190
      %p197 = scmp.eq.s32.totalorder %s29, 1
      %p198 = por %p196, %p197
      %p199 = scmp.ne.s32.totalorder %s190, %s191
      %p200 = scmp.eq.s32.totalorder %s29, 0
      %p201 = por %p199, %p200
      %p202 = scmp.ne.s32.totalorder %s190, %s191
      %p203 = scmp.eq.s32.totalorder %s30, 1
      %p204 = por %p202, %p203
      %p206 = scmp.ne.s32.totalorder %s191, %s205
      %p207 = scmp.eq.s32.totalorder %s30, 0
      %p208 = por %p206, %p207
      %s210 = sadd.s32 %s209, 1
      %p213 = scmp.eq.s32.totalorder %s24, 1
      %p214 = scmp.ne.s32.totalorder %s209, %s211
      %p215 = scmp.eq.s32.totalorder %s24, 0
      %p216 = por %p214, %p215
      %p217 = scmp.ne.s32.totalorder %s209, %s211
      %p218 = scmp.eq.s32.totalorder %s29, 1
      %p219 = por %p217, %p218
      %p220 = scmp.ne.s32.totalorder %s211, %s212
      %p221 = scmp.eq.s32.totalorder %s29, 0
      %p222 = por %p220, %p221
      %p223 = scmp.ne.s32.totalorder %s211, %s212
      %p224 = scmp.eq.s32.totalorder %s30, 1
      %p225 = por %p223, %p224
      %p227 = scmp.ne.s32.totalorder %s212, %s226
      %p228 = scmp.eq.s32.totalorder %s30, 0
      %p229 = por %p227, %p228
      %s230 = ssub.s32 %s31, %s43
      %s231 = ssub.s32 %s32, %s39
      %s232 = sor.u32 %s230, %s231
      %p233 = scmp.eq.s32.totalorder %s232, 0
      %s235 = sadd.s32 %s234, 1
      %s236 = scalar_select %p233, %s234, %s235
      %p239 = pneg %p233
      %p240 = scmp.eq.s32.totalorder %s24, 1
      %p241 = por %p239, %p240
      %p242 = scmp.ne.s32.totalorder %s234, %s237
      %p243 = scmp.eq.s32.totalorder %s24, 0
      %p244 = por %p242, %p243
      %p245 = scmp.ne.s32.totalorder %s234, %s237
      %p246 = scmp.eq.s32.totalorder %s29, 1
      %p247 = por %p245, %p246
      %p248 = scmp.ne.s32.totalorder %s237, %s238
      %p249 = scmp.eq.s32.totalorder %s29, 0
      %p250 = por %p248, %p249
      %p251 = scmp.ne.s32.totalorder %s237, %s238
      %p252 = scmp.eq.s32.totalorder %s30, 1
      %p253 = por %p251, %p252
      %p255 = scmp.ne.s32.totalorder %s238, %s254
      %p256 = scmp.eq.s32.totalorder %s30, 0
      %p257 = por %p255, %p256
      %p258 = scmp.le.s32.totalorder 1, %s24
      %p259 = scmp.lt.s32.totalorder %s24, 3
      %p260 = pnand %p258, %p259
      %p261 = pneg %p260
      // Predicated region
      $region9: #{tpu_custom_call.1} parent=5 // pred_check
        _
      $region10: #{tpu_custom_call.1} parent=5 // pred_check_branch
        %263 = sbr.rel (%p260) target = $region12
      $region11: #{tpu_custom_call.1} parent=5 // pred_region
        %s264 = ssub.s32 %s24, 1
        // Predicated region
        $region13: #{tpu_custom_call.1} parent=11 // pred_check
          %p265 = pneg %p117
        $region14: #{tpu_custom_call.1} parent=11 // pred_check_branch
          %267 = sbr.rel (%p265) target = $region16
        $region15: #{tpu_custom_call.1} parent=11 // pred_region
          %s269 = ssub.s32 6144, 6144
          %270 = vsyncadd [#allocation6], %s269
          %s271 = sshll.u32 [#allocation7], 4
          %s272 = int_to_ptr.vmem [resolvable:$true] %s271
          %277 = dma.hbm_to_vmem [thread:$0]  %s2, 6144, %s272, [#allocation6], 128, 128, 8
        $region16: #{tpu_custom_call.1} parent=11 // pred_fallthru
          _
        // Predicated region
        $region17: #{tpu_custom_call.1} parent=11 // pred_check
          %p278 = pneg %p138
        $region18: #{tpu_custom_call.1} parent=11 // pred_check_branch
          %280 = sbr.rel (%p278) target = $region20
        $region19: #{tpu_custom_call.1} parent=11 // pred_region
          _
        $region20: #{tpu_custom_call.1} parent=11 // pred_fallthru
          _
        // Predicated region
        $region21: #{tpu_custom_call.1} parent=11 // pred_check
          %p281 = pneg %p159
        $region22: #{tpu_custom_call.1} parent=11 // pred_check_branch
          %283 = sbr.rel (%p281) target = $region24
        $region23: #{tpu_custom_call.1} parent=11 // pred_region
          %s285 = ssub.s32 6144, 6144
          %286 = vsyncadd [#allocation9], %s285
          %s287 = sshll.u32 [#allocation8], 4
          %s288 = int_to_ptr.vmem [resolvable:$true] %s287
          %293 = dma.hbm_to_vmem [thread:$0]  %s4, 6144, %s288, [#allocation9], 128, 128, 8
        $region24: #{tpu_custom_call.1} parent=11 // pred_fallthru
          _
        // Predicated region
        $region25: #{tpu_custom_call.1} parent=11 // pred_check
          %p294 = pneg %p180
        $region26: #{tpu_custom_call.1} parent=11 // pred_check_branch
          %296 = sbr.rel (%p294) target = $region28
        $region27: #{tpu_custom_call.1} parent=11 // pred_region
          _
        $region28: #{tpu_custom_call.1} parent=11 // pred_fallthru
          _
        // Predicated region
        $region29: #{tpu_custom_call.1} parent=11 // pred_check
          %p297 = pneg %p201
        $region30: #{tpu_custom_call.1} parent=11 // pred_check_branch
          %299 = sbr.rel (%p297) target = $region32
        $region31: #{tpu_custom_call.1} parent=11 // pred_region
          %s301 = ssub.s32 2048, 2048
          %302 = vsyncadd [#allocation9], %s301
          %s303 = sshll.u32 [#allocation10], 4
          %s304 = int_to_ptr.vmem [resolvable:$true] %s303
          %309 = dma.hbm_to_vmem [thread:$0]  %s6, 2048, %s304, [#allocation9], 128, 128, 8
        $region32: #{tpu_custom_call.1} parent=11 // pred_fallthru
          _
        // Predicated region
        $region33: #{tpu_custom_call.1} parent=11 // pred_check
          %p310 = pneg %p222
        $region34: #{tpu_custom_call.1} parent=11 // pred_check_branch
          %312 = sbr.rel (%p310) target = $region36
        $region35: #{tpu_custom_call.1} parent=11 // pred_region
          _
        $region36: #{tpu_custom_call.1} parent=11 // pred_fallthru
          _
      $region12: #{tpu_custom_call.1} parent=5 // pred_fallthru
        _
      %p313 = scmp.lt.s32.totalorder %s24, 2
      // Predicated region
      $region37: #{tpu_custom_call.1} parent=5 // pred_check
        %p314 = pneg %p313
      $region38: #{tpu_custom_call.1} parent=5 // pred_check_branch
        %316 = sbr.rel (%p314) target = $region40
      $region39: #{tpu_custom_call.1} parent=5 // pred_region
        // Predicated region
        $region41: #{tpu_custom_call.1} parent=39 // pred_check
          %p317 = pneg %p58
        $region42: #{tpu_custom_call.1} parent=39 // pred_check_branch
          %319 = sbr.rel (%p317) target = $region44
        $region43: #{tpu_custom_call.1} parent=39 // pred_region
          %s320 = sand.u32 %s48, 1
          %s321 = scalar_lea.sflag [#allocation3], %s320
          %s322 = sand.u32 %s48, 1
          %s323 = smul.addr %s322, 16
          %s324 = scalar_lea.vmem [#allocation2], %s323
          %s325 = smul.u32 2, %s32
          %s326 = ssub.s32 3, %s325
          %p327 = scmp.lt.s32.totalorder %s326, 2
          %s328 = scalar_select %p327, %s326, 2
          %s329 = smul.u32 128, %s328
          %s331 = ssub.s32 256, %s329
          %332 = vsyncadd %s321, %s331
          %p333 = scmp.ne.s32.totalorder 0, %s329
          %s334 = smul.addr %s31, 3
          %s335 = sadd.s32 %s325, %s334
          %s336 = smul.addr %s335, 128
          %s337 = scalar_lea.hbm %s0, %s336
          %s338 = smul.u32 8, %s328
          %s339 = sshll.u32 %s324, 4
          %s340 = int_to_ptr.vmem [resolvable:$true] %s339
          %s341 = sshll.u32 %s338, 4
          %345 = dma.hbm_to_vmem [thread:$0]  (%p333), %s337, %s341, %s340, %s321, 128, 128, 8
        $region44: #{tpu_custom_call.1} parent=39 // pred_fallthru
          _
        // Predicated region
        $region45: #{tpu_custom_call.1} parent=39 // pred_check
          %p346 = pneg %p90
        $region46: #{tpu_custom_call.1} parent=39 // pred_check_branch
          %348 = sbr.rel (%p346) target = $region48
        $region47: #{tpu_custom_call.1} parent=39 // pred_region
          %s349 = sand.u32 %s24, 1
          %s350 = scalar_lea.sflag [#allocation6], %s349
          %s351 = sand.u32 %s80, 1
          %s352 = smul.addr %s351, 8
          %s353 = scalar_lea.vmem [#allocation5], %s352
          %s354 = sadd.s32 %s32, 1
          %s355 = smul.u32 %s354, 2
          %s357 = ssub.s32 128, 128
          %358 = vsyncadd %s350, %s357
          %s359 = smul.addr %s31, 3
          %s360 = sadd.s32 %s355, %s359
          %s361 = smul.addr %s360, 128
          %s362 = scalar_lea.hbm %s1, %s361
          %s364 = sshll.u32 %s353, 4
          %s365 = int_to_ptr.vmem [resolvable:$true] %s364
          %367 = dma.hbm_to_vmem [thread:$0]  %s362, 128, %s365, %s350
        $region48: #{tpu_custom_call.1} parent=39 // pred_fallthru
          _
      $region40: #{tpu_custom_call.1} parent=5 // pred_fallthru
        _
      %p368 = scmp.le.s32.totalorder 1, %s24
      %p369 = scmp.lt.s32.totalorder %s24, 3
      %p370 = pnand %p368, %p369
      %p371 = pneg %p370
      // Predicated region
      $region49: #{tpu_custom_call.1} parent=5 // pred_check
        _
      $region50: #{tpu_custom_call.1} parent=5 // pred_check_branch
        %373 = sbr.rel (%p370) target = $region52
      $region51: #{tpu_custom_call.1} parent=5 // pred_region
        %s374 = ssub.s32 %s24, 1
        %s375 = sand.u32 %s51, 1
        %s376 = scalar_lea.sflag [#allocation3], %s375
        %s377 = sand.u32 %s51, 1
        %s378 = smul.addr %s377, 16
        %s379 = scalar_lea.vmem [#allocation2], %s378
        // Predicated region
        $region53: #{tpu_custom_call.1} parent=51 // pred_check
          %p380 = pneg %p64
        $region54: #{tpu_custom_call.1} parent=51 // pred_check_branch
          %382 = sbr.rel (%p380) target = $region56
        $region55: #{tpu_custom_call.1} parent=51 // pred_region
          %383 = dma.done %s376, 256
        $region56: #{tpu_custom_call.1} parent=51 // pred_fallthru
          _
        %s384 = sand.u32 %s29, 1
        %s385 = scalar_lea.sflag [#allocation6], %s384
        %s386 = sand.u32 %s83, 1
        %s387 = smul.addr %s386, 8
        %s388 = scalar_lea.vmem [#allocation5], %s387
        // Predicated region
        $region57: #{tpu_custom_call.1} parent=51 // pred_check
          %p389 = pneg %p96
        $region58: #{tpu_custom_call.1} parent=51 // pred_check_branch
          %391 = sbr.rel (%p389) target = $region60
        $region59: #{tpu_custom_call.1} parent=51 // pred_region
          %392 = dma.done %s385, 128
        $region60: #{tpu_custom_call.1} parent=51 // pred_fallthru
          _
        // Predicated region
        $region61: #{tpu_custom_call.1} parent=51 // pred_check
          %p393 = pneg %p117
        $region62: #{tpu_custom_call.1} parent=51 // pred_check_branch
          %395 = sbr.rel (%p393) target = $region64
        $region63: #{tpu_custom_call.1} parent=51 // pred_region
          %396 = dma.done [#allocation6], 6144
        $region64: #{tpu_custom_call.1} parent=51 // pred_fallthru
          _
        // Predicated region
        $region65: #{tpu_custom_call.1} parent=51 // pred_check
          %p397 = pneg %p159
        $region66: #{tpu_custom_call.1} parent=51 // pred_check_branch
          %399 = sbr.rel (%p397) target = $region68
        $region67: #{tpu_custom_call.1} parent=51 // pred_region
          %400 = dma.done [#allocation9], 6144
        $region68: #{tpu_custom_call.1} parent=51 // pred_fallthru
          _
        // Predicated region
        $region69: #{tpu_custom_call.1} parent=51 // pred_check
          %p401 = pneg %p201
        $region70: #{tpu_custom_call.1} parent=51 // pred_check_branch
          %403 = sbr.rel (%p401) target = $region72
        $region71: #{tpu_custom_call.1} parent=51 // pred_region
          %404 = dma.done [#allocation9], 2048
        $region72: #{tpu_custom_call.1} parent=51 // pred_fallthru
          _
        %s405 = sand.u32 %s51, 1
        %s406 = scalar_lea.sflag [#allocation3], %s405
        %s407 = sand.u32 %s51, 1
        %s408 = smul.addr %s407, 16
        %s409 = scalar_lea.vmem [#allocation2], %s408
        %p410 = pneg %p64
        %p411 = pneg %p61
        %s412 = sand.u32 %s29, 1
        %s413 = scalar_lea.sflag [#allocation6], %s412
        %s414 = sand.u32 %s83, 1
        %s415 = smul.addr %s414, 8
        %s416 = scalar_lea.vmem [#allocation5], %s415
        %p417 = pneg %p96
        %p418 = pneg %p93
        %p419 = pneg %p117
        %p420 = pneg %p114
        %p421 = pneg %p138
        %p422 = pneg %p135
        %p423 = pneg %p159
        %p424 = pneg %p156
        %p425 = pneg %p180
        %p426 = pneg %p177
        %p427 = pneg %p201
        %p428 = pneg %p198
        %p429 = pneg %p222
        %p430 = pneg %p219
        %p431 = pneg %p250
        %p432 = pneg %p247
        %s433 = sand.u32 %s237, 1
        %s434 = scalar_lea.sflag [#allocation4], %s433
        %s435 = sand.u32 %s237, 1
        %s436 = smul.addr %s435, 16
        %s437 = scalar_lea.vmem [#allocation11], %s436
        %s438 = smul.u32 2, %s34
        %s439 = ssub.s32 3, %s438
        %p440 = scmp.lt.s32.totalorder %s439, 2
        %s441 = scalar_select %p440, %s439, 2
        %s442 = smul.u32 128, %s441
        %s443 = sadd.s32 %s34, 1
        %s444 = smul.u32 %s443, 2
        %s445 = smul.u32 2, %s34
        %s446 = smul.u32 %s34, 16
        %v447 = vld [vmem:[%s379] sm:$0xff]
        %v448 = vld [vmem:[%s379 + $0x8] sm:$0xff]
        %v449 = vld [vmem:[%s388] sm:$0xff]
        %vm453 = vcmask 1045504
        %v454 = vrot.slane %v447, 2
        %v455 = vrot.slane %v448, 2
        %v456 = vsel %vm453, %v454, %v455
        %v457 = vrot.slane %v449, 2
        %v458 = vsel %vm453, %v455, %v457
        %vm462 = vcmask 1043456
        %v463 = vrot.slane %v447, 4
        %v464 = vrot.slane %v448, 4
        %v465 = vsel %vm462, %v463, %v464
        %v466 = vrot.slane %v449, 4
        %v467 = vsel %vm462, %v464, %v466
        %v471 = vld [vmem:[#allocation7] sm:$0xff]
        %v472 = vld [vmem:[#allocation7 + $0x8] sm:$0xff]
        %v473 = vld [vmem:[#allocation7 + $0x10] sm:$0xff]
        %v474 = vld [vmem:[#allocation7 + $0x18] sm:$0xff]
        %v475 = vld [vmem:[#allocation7 + $0x20] sm:$0xff]
        %v476 = vld [vmem:[#allocation7 + $0x28] sm:$0xff]
        %v477 = vld [vmem:[#allocation7 + $0x30] sm:$0xff]
        %v478 = vld [vmem:[#allocation7 + $0x38] sm:$0xff]
        %v479 = vld [vmem:[#allocation7 + $0x40] sm:$0xff]
        %v480 = vld [vmem:[#allocation7 + $0x48] sm:$0xff]
        %v481 = vld [vmem:[#allocation7 + $0x50] sm:$0xff]
        %v482 = vld [vmem:[#allocation7 + $0x58] sm:$0xff]
        %v483 = vld [vmem:[#allocation7 + $0x60] sm:$0xff]
        %v484 = vld [vmem:[#allocation7 + $0x68] sm:$0xff]
        %v485 = vld [vmem:[#allocation7 + $0x70] sm:$0xff]
        %v486 = vld [vmem:[#allocation7 + $0x78] sm:$0xff]
        %v487 = vld [vmem:[#allocation7 + $0x80] sm:$0xff]
        %v488 = vld [vmem:[#allocation7 + $0x88] sm:$0xff]
        %v489 = vld [vmem:[#allocation7 + $0x90] sm:$0xff]
        %v490 = vld [vmem:[#allocation7 + $0x98] sm:$0xff]
        %v491 = vld [vmem:[#allocation7 + $0xa0] sm:$0xff]
        %v492 = vld [vmem:[#allocation7 + $0xa8] sm:$0xff]
        %v493 = vld [vmem:[#allocation7 + $0xb0] sm:$0xff]
        %v494 = vld [vmem:[#allocation7 + $0xb8] sm:$0xff]
        %v495 = vld [vmem:[#allocation7 + $0xc0] sm:$0xff]
        %v496 = vld [vmem:[#allocation7 + $0xc8] sm:$0xff]
        %v497 = vld [vmem:[#allocation7 + $0xd0] sm:$0xff]
        %v498 = vld [vmem:[#allocation7 + $0xd8] sm:$0xff]
        %v499 = vld [vmem:[#allocation7 + $0xe0] sm:$0xff]
        %v500 = vld [vmem:[#allocation7 + $0xe8] sm:$0xff]
        %v501 = vld [vmem:[#allocation7 + $0xf0] sm:$0xff]
        %v502 = vld [vmem:[#allocation7 + $0xf8] sm:$0xff]
        %v503 = vld [vmem:[#allocation7 + $0x100] sm:$0xff]
        %v504 = vld [vmem:[#allocation7 + $0x108] sm:$0xff]
        %v505 = vld [vmem:[#allocation7 + $0x110] sm:$0xff]
        %v506 = vld [vmem:[#allocation7 + $0x118] sm:$0xff]
        %v507 = vld [vmem:[#allocation7 + $0x120] sm:$0xff]
        %v508 = vld [vmem:[#allocation7 + $0x128] sm:$0xff]
        %v509 = vld [vmem:[#allocation7 + $0x130] sm:$0xff]
        %v510 = vld [vmem:[#allocation7 + $0x138] sm:$0xff]
        %v511 = vld [vmem:[#allocation7 + $0x140] sm:$0xff]
        %v512 = vld [vmem:[#allocation7 + $0x148] sm:$0xff]
        %v513 = vld [vmem:[#allocation7 + $0x150] sm:$0xff]
        %v514 = vld [vmem:[#allocation7 + $0x158] sm:$0xff]
        %v515 = vld [vmem:[#allocation7 + $0x160] sm:$0xff]
        %v516 = vld [vmem:[#allocation7 + $0x168] sm:$0xff]
        %v517 = vld [vmem:[#allocation7 + $0x170] sm:$0xff]
        %v518 = vld [vmem:[#allocation7 + $0x178] sm:$0xff]
        %v519 = vld [vmem:[%s3] sm:$0x1]
        %v521 = vlaneseq
        %v522 = vshrl.u32 %v521, 7
        %v523 = vsub.s32 0, %v522
        %v524 = vrot.slane %v519, %v523
        %526 = vmatprep.subr.mxu0 0.0
        %527 = vmatpush1.msra.mxu0 %v471
        %528 = vmatprep.subr.mxu0 0.0
        %529 = vmatpush1.msra.mxu0 %v472
        %530 = vmatprep.subr.mxu0 0.0
        %531 = vmatpush1.msra.mxu0 %v473
        %532 = vmatprep.subr.mxu0 0.0
        %533 = vmatpush1.msra.mxu0 %v474
        %534 = vmatprep.subr.mxu0 0.0
        %535 = vmatpush1.msra.mxu0 %v475
        %536 = vmatprep.subr.mxu0 0.0
        %537 = vmatpush1.msra.mxu0 %v476
        %538 = vmatprep.subr.mxu0 0.0
        %539 = vmatpush1.msra.mxu0 %v477
        %540 = vmatprep.subr.mxu0 0.0
        %541 = vmatpush1.msra.mxu0 %v478
        %542 = vmatprep.subr.mxu0 0.0
        %543 = vmatpush1.msra.mxu0 %v479
        %544 = vmatprep.subr.mxu0 0.0
        %545 = vmatpush1.msra.mxu0 %v480
        %546 = vmatprep.subr.mxu0 0.0
        %547 = vmatpush1.msra.mxu0 %v481
        %548 = vmatprep.subr.mxu0 0.0
        %549 = vmatpush1.msra.mxu0 %v482
        %550 = vmatprep.subr.mxu0 0.0
        %551 = vmatpush1.msra.mxu0 %v483
        %552 = vmatprep.subr.mxu0 0.0
        %553 = vmatpush1.msra.mxu0 %v484
        %554 = vmatprep.subr.mxu0 0.0
        %555 = vmatpush1.msra.mxu0 %v485
        %556 = vmatprep.subr.mxu0 0.0
        %557 = vmatpush1.msra.mxu0 %v486
        %558 = vmatprep.subr.mxu0 0.0
        %559 = vmatpush1.msra.mxu0 %v487
        %560 = vmatprep.subr.mxu0 0.0
        %561 = vmatpush1.msra.mxu0 %v488
        %562 = vmatprep.subr.mxu0 0.0
        %563 = vmatpush1.msra.mxu0 %v489
        %564 = vmatprep.subr.mxu0 0.0
        %565 = vmatpush1.msra.mxu0 %v490
        %566 = vmatprep.subr.mxu0 0.0
        %567 = vmatpush1.msra.mxu0 %v491
        %568 = vmatprep.subr.mxu0 0.0
        %569 = vmatpush1.msra.mxu0 %v492
        %570 = vmatprep.subr.mxu0 0.0
        %571 = vmatpush1.msra.mxu0 %v493
        %572 = vmatprep.subr.mxu0 0.0
        %573 = vmatpush1.msra.mxu0 %v494
        %574 = vmatprep.subr.mxu0 0.0
        %575 = vmatpush1.msra.mxu0 %v495
        %576 = vmatprep.subr.mxu0 0.0
        %577 = vmatpush1.msra.mxu0 %v496
        %578 = vmatprep.subr.mxu0 0.0
        %579 = vmatpush1.msra.mxu0 %v497
        %580 = vmatprep.subr.mxu0 0.0
        %581 = vmatpush1.msra.mxu0 %v498
        %582 = vmatprep.subr.mxu0 0.0
        %583 = vmatpush1.msra.mxu0 %v499
        %584 = vmatprep.subr.mxu0 0.0
        %585 = vmatpush1.msra.mxu0 %v500
        %586 = vmatprep.subr.mxu0 0.0
        %587 = vmatpush1.msra.mxu0 %v501
        %588 = vmatprep.subr.mxu0 0.0
        %589 = vmatpush1.msra.mxu0 %v502
        %590 = vmatprep.mubr.f32.mxu0 %v456
        %591 = vmatmul.mubr.f32.gmra.mrb[0].mxu0 %v447
        %v592 = vpop.f32.mrb[0].mxu0
        %v593 = vadd.f32 %v524, %v592
        %v594 = vpop.f32.mrb[0].mxu0
        %595 = vmatprep.mubr.f32.mxu0 %v458
        %596 = vmatmul.mubr.f32.gmra.mrb[0].mxu0 %v448
        %v597 = vpop.f32.mrb[0].mxu0
        %v598 = vadd.f32 %v524, %v597
        %v599 = vpop.f32.mrb[0].mxu0
        %600 = vmatprep.mubr.f32.mxu0 %v457
        %601 = vmatmul.mubr.f32.gmra.mrb[0].mxu0 %v449
        %v602 = vpop.f32.mrb[0].mxu0
        %v603 = vadd.f32 %v524, %v602
        %v604 = vpop.f32.mrb[0].mxu0
        %605 = vdwg.mxu0
        %606 = vmatprep.subr.mxu0 0.0
        %607 = vmatpush1.msra.mxu0 %v503
        %608 = vmatprep.subr.mxu0 0.0
        %609 = vmatpush1.msra.mxu0 %v504
        %610 = vmatprep.subr.mxu0 0.0
        %611 = vmatpush1.msra.mxu0 %v505
        %612 = vmatprep.subr.mxu0 0.0
        %613 = vmatpush1.msra.mxu0 %v506
        %614 = vmatprep.subr.mxu0 0.0
        %615 = vmatpush1.msra.mxu0 %v507
        %616 = vmatprep.subr.mxu0 0.0
        %617 = vmatpush1.msra.mxu0 %v508
        %618 = vmatprep.subr.mxu0 0.0
        %619 = vmatpush1.msra.mxu0 %v509
        %620 = vmatprep.subr.mxu0 0.0
        %621 = vmatpush1.msra.mxu0 %v510
        %622 = vmatprep.subr.mxu0 0.0
        %623 = vmatpush1.msra.mxu0 %v511
        %624 = vmatprep.subr.mxu0 0.0
        %625 = vmatpush1.msra.mxu0 %v512
        %626 = vmatprep.subr.mxu0 0.0
        %627 = vmatpush1.msra.mxu0 %v513
        %628 = vmatprep.subr.mxu0 0.0
        %629 = vmatpush1.msra.mxu0 %v514
        %630 = vmatprep.subr.mxu0 0.0
        %631 = vmatpush1.msra.mxu0 %v515
        %632 = vmatprep.subr.mxu0 0.0
        %633 = vmatpush1.msra.mxu0 %v516
        %634 = vmatprep.subr.mxu0 0.0
        %635 = vmatpush1.msra.mxu0 %v517
        %636 = vmatprep.subr.mxu0 0.0
        %637 = vmatpush1.msra.mxu0 %v518
        %638 = vmatprep.subr.mxu0 0.0
        %639 = vmatpush1.msra.mxu0 0.0
        %640 = vmatprep.subr.mxu0 0.0
        %641 = vmatpush1.msra.mxu0 0.0
        %642 = vmatprep.subr.mxu0 0.0
        %643 = vmatpush1.msra.mxu0 0.0
        %644 = vmatprep.subr.mxu0 0.0
        %645 = vmatpush1.msra.mxu0 0.0
        %646 = vmatprep.subr.mxu0 0.0
        %647 = vmatpush1.msra.mxu0 0.0
        %648 = vmatprep.subr.mxu0 0.0
        %649 = vmatpush1.msra.mxu0 0.0
        %650 = vmatprep.subr.mxu0 0.0
        %651 = vmatpush1.msra.mxu0 0.0
        %652 = vmatprep.subr.mxu0 0.0
        %653 = vmatpush1.msra.mxu0 0.0
        %654 = vmatprep.subr.mxu0 0.0
        %655 = vmatpush1.msra.mxu0 0.0
        %656 = vmatprep.subr.mxu0 0.0
        %657 = vmatpush1.msra.mxu0 0.0
        %658 = vmatprep.subr.mxu0 0.0
        %659 = vmatpush1.msra.mxu0 0.0
        %660 = vmatprep.subr.mxu0 0.0
        %661 = vmatpush1.msra.mxu0 0.0
        %662 = vmatprep.subr.mxu0 0.0
        %663 = vmatpush1.msra.mxu0 0.0
        %664 = vmatprep.subr.mxu0 0.0
        %665 = vmatpush1.msra.mxu0 0.0
        %666 = vmatprep.subr.mxu0 0.0
        %667 = vmatpush1.msra.mxu0 0.0
        %668 = vmatprep.subr.mxu0 0.0
        %669 = vmatpush1.msra.mxu0 0.0
        %670 = vmatprep.mubr.f32.mxu0 0.0
        %671 = vmatmul.mubr.f32.gmra.mrb[0].mxu0 %v465
        %v672 = vpop.f32.mrb[0].mxu0
        %v673 = vadd.f32 %v593, %v672
        %v674 = vpop.f32.mrb[0].mxu0
        %675 = vmatprep.mubr.f32.mxu0 0.0
        %676 = vmatmul.mubr.f32.gmra.mrb[0].mxu0 %v467
        %v677 = vpop.f32.mrb[0].mxu0
        %v678 = vadd.f32 %v598, %v677
        %v679 = vpop.f32.mrb[0].mxu0
        %680 = vmatprep.mubr.f32.mxu0 0.0
        %681 = vmatmul.mubr.f32.gmra.mrb[0].mxu0 %v466
        %v682 = vpop.f32.mrb[0].mxu0
        %v683 = vadd.f32 %v603, %v682
        %v684 = vpop.f32.mrb[0].mxu0
        %685 = vdwg.mxu0
        %v686 = vlaneseq
        %v687 = vshrl.u32 %v686, 7
        %v688 = vadd.s32 %v687, 8
        %v689 = vadd.s32 %v687, 16
        %v690 = vstv %s446
        %v691 = vadd.s32 %v690, %v687
        %v692 = vadd.s32 %v690, %v688
        %v693 = vadd.s32 %v690, %v689
        %vm694 = vcmp.ge.s32.totalorder %v691, 1
        %vm695 = vcmp.ge.s32.totalorder %v692, 1
        %vm696 = vcmp.ge.s32.totalorder %v693, 1
        %vm697 = vcmp.lt.s32.totalorder %v691, 15
        %vm698 = vcmp.lt.s32.totalorder %v692, 15
        %vm699 = vcmp.lt.s32.totalorder %v693, 15
        %vm700 = vmand %vm694, %vm697
        %vm701 = vmand %vm695, %vm698
        %vm702 = vmand %vm696, %vm699
        %v703 = vmax.f32 %v673, 0.0
        %v704 = vmax.f32 %v678, 0.0
        %v705 = vmax.f32 %v683, 0.0
        %v706 = vsel %vm700, 1, 0
        %v707 = vsel %vm701, 1, 0
        %v708 = vsel %vm702, 1, 0
        %vm709 = vcmp.eq.s32.totalorder %v706, 1
        %vm710 = vcmp.eq.s32.totalorder %v707, 1
        %vm711 = vcmp.eq.s32.totalorder %v708, 1
        %v712 = vsel %vm709, %v703, 0.0
        %v713 = vsel %vm710, %v704, 0.0
        %v714 = vsel %vm711, %v705, 0.0
        %v718 = vrot.slane %v712, 2
        %v719 = vrot.slane %v713, 2
        %v720 = vsel %vm453, %v718, %v719
        %v721 = vrot.slane %v714, 2
        %v722 = vsel %vm453, %v719, %v721
        %v725 = vrot.slane %v712, 4
        %v726 = vrot.slane %v713, 4
        %v727 = vsel %vm462, %v725, %v726
        %v728 = vrot.slane %v714, 4
        %v729 = vsel %vm462, %v726, %v728
        %v732 = vld [vmem:[#allocation8] sm:$0xff]
        %v733 = vld [vmem:[#allocation8 + $0x8] sm:$0xff]
        %v734 = vld [vmem:[#allocation8 + $0x10] sm:$0xff]
        %v735 = vld [vmem:[#allocation8 + $0x18] sm:$0xff]
        %v736 = vld [vmem:[#allocation8 + $0x20] sm:$0xff]
        %v737 = vld [vmem:[#allocation8 + $0x28] sm:$0xff]
        %v738 = vld [vmem:[#allocation8 + $0x30] sm:$0xff]
        %v739 = vld [vmem:[#allocation8 + $0x38] sm:$0xff]
        %v740 = vld [vmem:[#allocation8 + $0x40] sm:$0xff]
        %v741 = vld [vmem:[#allocation8 + $0x48] sm:$0xff]
        %v742 = vld [vmem:[#allocation8 + $0x50] sm:$0xff]
        %v743 = vld [vmem:[#allocation8 + $0x58] sm:$0xff]
        %v744 = vld [vmem:[#allocation8 + $0x60] sm:$0xff]
        %v745 = vld [vmem:[#allocation8 + $0x68] sm:$0xff]
        %v746 = vld [vmem:[#allocation8 + $0x70] sm:$0xff]
        %v747 = vld [vmem:[#allocation8 + $0x78] sm:$0xff]
        %v748 = vld [vmem:[#allocation8 + $0x80] sm:$0xff]
        %v749 = vld [vmem:[#allocation8 + $0x88] sm:$0xff]
        %v750 = vld [vmem:[#allocation8 + $0x90] sm:$0xff]
        %v751 = vld [vmem:[#allocation8 + $0x98] sm:$0xff]
        %v752 = vld [vmem:[#allocation8 + $0xa0] sm:$0xff]
        %v753 = vld [vmem:[#allocation8 + $0xa8] sm:$0xff]
        %v754 = vld [vmem:[#allocation8 + $0xb0] sm:$0xff]
        %v755 = vld [vmem:[#allocation8 + $0xb8] sm:$0xff]
        %v756 = vld [vmem:[#allocation8 + $0xc0] sm:$0xff]
        %v757 = vld [vmem:[#allocation8 + $0xc8] sm:$0xff]
        %v758 = vld [vmem:[#allocation8 + $0xd0] sm:$0xff]
        %v759 = vld [vmem:[#allocation8 + $0xd8] sm:$0xff]
        %v760 = vld [vmem:[#allocation8 + $0xe0] sm:$0xff]
        %v761 = vld [vmem:[#allocation8 + $0xe8] sm:$0xff]
        %v762 = vld [vmem:[#allocation8 + $0xf0] sm:$0xff]
        %v763 = vld [vmem:[#allocation8 + $0xf8] sm:$0xff]
        %v764 = vld [vmem:[#allocation8 + $0x100] sm:$0xff]
        %v765 = vld [vmem:[#allocation8 + $0x108] sm:$0xff]
        %v766 = vld [vmem:[#allocation8 + $0x110] sm:$0xff]
        %v767 = vld [vmem:[#allocation8 + $0x118] sm:$0xff]
        %v768 = vld [vmem:[#allocation8 + $0x120] sm:$0xff]
        %v769 = vld [vmem:[#allocation8 + $0x128] sm:$0xff]
        %v770 = vld [vmem:[#allocation8 + $0x130] sm:$0xff]
        %v771 = vld [vmem:[#allocation8 + $0x138] sm:$0xff]
        %v772 = vld [vmem:[#allocation8 + $0x140] sm:$0xff]
        %v773 = vld [vmem:[#allocation8 + $0x148] sm:$0xff]
        %v774 = vld [vmem:[#allocation8 + $0x150] sm:$0xff]
        %v775 = vld [vmem:[#allocation8 + $0x158] sm:$0xff]
        %v776 = vld [vmem:[#allocation8 + $0x160] sm:$0xff]
        %v777 = vld [vmem:[#allocation8 + $0x168] sm:$0xff]
        %v778 = vld [vmem:[#allocation8 + $0x170] sm:$0xff]
        %v779 = vld [vmem:[#allocation8 + $0x178] sm:$0xff]
        %v780 = vld [vmem:[%s5] sm:$0x1]
        %v782 = vlaneseq
        %v783 = vshrl.u32 %v782, 7
        %v784 = vsub.s32 0, %v783
        %v785 = vrot.slane %v780, %v784
        %787 = vmatprep.subr.mxu0 0.0
        %788 = vmatpush1.msra.mxu0 %v732
        %789 = vmatprep.subr.mxu0 0.0
        %790 = vmatpush1.msra.mxu0 %v733
        %791 = vmatprep.subr.mxu0 0.0
        %792 = vmatpush1.msra.mxu0 %v734
        %793 = vmatprep.subr.mxu0 0.0
        %794 = vmatpush1.msra.mxu0 %v735
        %795 = vmatprep.subr.mxu0 0.0
        %796 = vmatpush1.msra.mxu0 %v736
        %797 = vmatprep.subr.mxu0 0.0
        %798 = vmatpush1.msra.mxu0 %v737
        %799 = vmatprep.subr.mxu0 0.0
        %800 = vmatpush1.msra.mxu0 %v738
        %801 = vmatprep.subr.mxu0 0.0
        %802 = vmatpush1.msra.mxu0 %v739
        %803 = vmatprep.subr.mxu0 0.0
        %804 = vmatpush1.msra.mxu0 %v740
        %805 = vmatprep.subr.mxu0 0.0
        %806 = vmatpush1.msra.mxu0 %v741
        %807 = vmatprep.subr.mxu0 0.0
        %808 = vmatpush1.msra.mxu0 %v742
        %809 = vmatprep.subr.mxu0 0.0
        %810 = vmatpush1.msra.mxu0 %v743
        %811 = vmatprep.subr.mxu0 0.0
        %812 = vmatpush1.msra.mxu0 %v744
        %813 = vmatprep.subr.mxu0 0.0
        %814 = vmatpush1.msra.mxu0 %v745
        %815 = vmatprep.subr.mxu0 0.0
        %816 = vmatpush1.msra.mxu0 %v746
        %817 = vmatprep.subr.mxu0 0.0
        %818 = vmatpush1.msra.mxu0 %v747
        %819 = vmatprep.subr.mxu0 0.0
        %820 = vmatpush1.msra.mxu0 %v748
        %821 = vmatprep.subr.mxu0 0.0
        %822 = vmatpush1.msra.mxu0 %v749
        %823 = vmatprep.subr.mxu0 0.0
        %824 = vmatpush1.msra.mxu0 %v750
        %825 = vmatprep.subr.mxu0 0.0
        %826 = vmatpush1.msra.mxu0 %v751
        %827 = vmatprep.subr.mxu0 0.0
        %828 = vmatpush1.msra.mxu0 %v752
        %829 = vmatprep.subr.mxu0 0.0
        %830 = vmatpush1.msra.mxu0 %v753
        %831 = vmatprep.subr.mxu0 0.0
        %832 = vmatpush1.msra.mxu0 %v754
        %833 = vmatprep.subr.mxu0 0.0
        %834 = vmatpush1.msra.mxu0 %v755
        %835 = vmatprep.subr.mxu0 0.0
        %836 = vmatpush1.msra.mxu0 %v756
        %837 = vmatprep.subr.mxu0 0.0
        %838 = vmatpush1.msra.mxu0 %v757
        %839 = vmatprep.subr.mxu0 0.0
        %840 = vmatpush1.msra.mxu0 %v758
        %841 = vmatprep.subr.mxu0 0.0
        %842 = vmatpush1.msra.mxu0 %v759
        %843 = vmatprep.subr.mxu0 0.0
        %844 = vmatpush1.msra.mxu0 %v760
        %845 = vmatprep.subr.mxu0 0.0
        %846 = vmatpush1.msra.mxu0 %v761
        %847 = vmatprep.subr.mxu0 0.0
        %848 = vmatpush1.msra.mxu0 %v762
        %849 = vmatprep.subr.mxu0 0.0
        %850 = vmatpush1.msra.mxu0 %v763
        %851 = vmatprep.mubr.f32.mxu0 %v720
        %852 = vmatmul.mubr.f32.gmra.mrb[0].mxu0 %v712
        %v853 = vpop.f32.mrb[0].mxu0
        %v854 = vadd.f32 %v785, %v853
        %v855 = vpop.f32.mrb[0].mxu0
        %856 = vmatprep.mubr.f32.mxu0 %v722
        %857 = vmatmul.mubr.f32.gmra.mrb[0].mxu0 %v713
        %v858 = vpop.f32.mrb[0].mxu0
        %v859 = vadd.f32 %v785, %v858
        %v860 = vpop.f32.mrb[0].mxu0
        %861 = vdwg.mxu0
        %862 = vmatprep.subr.mxu0 0.0
        %863 = vmatpush1.msra.mxu0 %v764
        %864 = vmatprep.subr.mxu0 0.0
        %865 = vmatpush1.msra.mxu0 %v765
        %866 = vmatprep.subr.mxu0 0.0
        %867 = vmatpush1.msra.mxu0 %v766
        %868 = vmatprep.subr.mxu0 0.0
        %869 = vmatpush1.msra.mxu0 %v767
        %870 = vmatprep.subr.mxu0 0.0
        %871 = vmatpush1.msra.mxu0 %v768
        %872 = vmatprep.subr.mxu0 0.0
        %873 = vmatpush1.msra.mxu0 %v769
        %874 = vmatprep.subr.mxu0 0.0
        %875 = vmatpush1.msra.mxu0 %v770
        %876 = vmatprep.subr.mxu0 0.0
        %877 = vmatpush1.msra.mxu0 %v771
        %878 = vmatprep.subr.mxu0 0.0
        %879 = vmatpush1.msra.mxu0 %v772
        %880 = vmatprep.subr.mxu0 0.0
        %881 = vmatpush1.msra.mxu0 %v773
        %882 = vmatprep.subr.mxu0 0.0
        %883 = vmatpush1.msra.mxu0 %v774
        %884 = vmatprep.subr.mxu0 0.0
        %885 = vmatpush1.msra.mxu0 %v775
        %886 = vmatprep.subr.mxu0 0.0
        %887 = vmatpush1.msra.mxu0 %v776
        %888 = vmatprep.subr.mxu0 0.0
        %889 = vmatpush1.msra.mxu0 %v777
        %890 = vmatprep.subr.mxu0 0.0
        %891 = vmatpush1.msra.mxu0 %v778
        %892 = vmatprep.subr.mxu0 0.0
        %893 = vmatpush1.msra.mxu0 %v779
        %894 = vmatprep.subr.mxu0 0.0
        %895 = vmatpush1.msra.mxu0 0.0
        %896 = vmatprep.subr.mxu0 0.0
        %897 = vmatpush1.msra.mxu0 0.0
        %898 = vmatprep.subr.mxu0 0.0
        %899 = vmatpush1.msra.mxu0 0.0
        %900 = vmatprep.subr.mxu0 0.0
        %901 = vmatpush1.msra.mxu0 0.0
        %902 = vmatprep.subr.mxu0 0.0
        %903 = vmatpush1.msra.mxu0 0.0
        %904 = vmatprep.subr.mxu0 0.0
        %905 = vmatpush1.msra.mxu0 0.0
        %906 = vmatprep.subr.mxu0 0.0
        %907 = vmatpush1.msra.mxu0 0.0
        %908 = vmatprep.subr.mxu0 0.0
        %909 = vmatpush1.msra.mxu0 0.0
        %910 = vmatprep.subr.mxu0 0.0
        %911 = vmatpush1.msra.mxu0 0.0
        %912 = vmatprep.subr.mxu0 0.0
        %913 = vmatpush1.msra.mxu0 0.0
        %914 = vmatprep.subr.mxu0 0.0
        %915 = vmatpush1.msra.mxu0 0.0
        %916 = vmatprep.subr.mxu0 0.0
        %917 = vmatpush1.msra.mxu0 0.0
        %918 = vmatprep.subr.mxu0 0.0
        %919 = vmatpush1.msra.mxu0 0.0
        %920 = vmatprep.subr.mxu0 0.0
        %921 = vmatpush1.msra.mxu0 0.0
        %922 = vmatprep.subr.mxu0 0.0
        %923 = vmatpush1.msra.mxu0 0.0
        %924 = vmatprep.subr.mxu0 0.0
        %925 = vmatpush1.msra.mxu0 0.0
        %926 = vmatprep.mubr.f32.mxu0 0.0
        %927 = vmatmul.mubr.f32.gmra.mrb[0].mxu0 %v727
        %v928 = vpop.f32.mrb[0].mxu0
        %v929 = vadd.f32 %v854, %v928
        %v930 = vpop.f32.mrb[0].mxu0
        %931 = vmatprep.mubr.f32.mxu0 0.0
        %932 = vmatmul.mubr.f32.gmra.mrb[0].mxu0 %v729
        %v933 = vpop.f32.mrb[0].mxu0
        %v934 = vadd.f32 %v859, %v933
        %v935 = vpop.f32.mrb[0].mxu0
        %936 = vdwg.mxu0
        %vm937 = vcmp.lt.s32.totalorder %v691, 12
        %vm938 = vcmp.lt.s32.totalorder %v692, 12
        %v939 = vmax.f32 %v929, 0.0
        %v940 = vmax.f32 %v934, 0.0
        %v941 = vsel %vm937, 1, 0
        %v942 = vsel %vm938, 1, 0
        %vm943 = vcmp.eq.s32.totalorder %v941, 1
        %vm944 = vcmp.eq.s32.totalorder %v942, 1
        %v945 = vsel %vm943, %v939, 0.0
        %v946 = vsel %vm944, %v940, 0.0
        %v947 = vld [vmem:[#allocation10] sm:$0xff]
        %v948 = vld [vmem:[#allocation10 + $0x8] sm:$0xff]
        %v949 = vld [vmem:[#allocation10 + $0x10] sm:$0xff]
        %v950 = vld [vmem:[#allocation10 + $0x18] sm:$0xff]
        %v951 = vld [vmem:[#allocation10 + $0x20] sm:$0xff]
        %v952 = vld [vmem:[#allocation10 + $0x28] sm:$0xff]
        %v953 = vld [vmem:[#allocation10 + $0x30] sm:$0xff]
        %v954 = vld [vmem:[#allocation10 + $0x38] sm:$0xff]
        %v955 = vld [vmem:[#allocation10 + $0x40] sm:$0xff]
        %v956 = vld [vmem:[#allocation10 + $0x48] sm:$0xff]
        %v957 = vld [vmem:[#allocation10 + $0x50] sm:$0xff]
        %v958 = vld [vmem:[#allocation10 + $0x58] sm:$0xff]
        %v959 = vld [vmem:[#allocation10 + $0x60] sm:$0xff]
        %v960 = vld [vmem:[#allocation10 + $0x68] sm:$0xff]
        %v961 = vld [vmem:[#allocation10 + $0x70] sm:$0xff]
        %v962 = vld [vmem:[#allocation10 + $0x78] sm:$0xff]
        %v963 = vld [vmem:[%s7] sm:$0x1]
        %v965 = vlaneseq
        %v966 = vshrl.u32 %v965, 7
        %v967 = vsub.s32 0, %v966
        %v968 = vrot.slane %v963, %v967
        %970 = vmatprep.subr.mxu0 0.0
        %971 = vmatpush1.msra.mxu0 %v947
        %972 = vmatprep.subr.mxu0 0.0
        %973 = vmatpush1.msra.mxu0 %v948
        %974 = vmatprep.subr.mxu0 0.0
        %975 = vmatpush1.msra.mxu0 %v949
        %976 = vmatprep.subr.mxu0 0.0
        %977 = vmatpush1.msra.mxu0 %v950
        %978 = vmatprep.subr.mxu0 0.0
        %979 = vmatpush1.msra.mxu0 %v951
        %980 = vmatprep.subr.mxu0 0.0
        %981 = vmatpush1.msra.mxu0 %v952
        %982 = vmatprep.subr.mxu0 0.0
        %983 = vmatpush1.msra.mxu0 %v953
        %984 = vmatprep.subr.mxu0 0.0
        %985 = vmatpush1.msra.mxu0 %v954
        %986 = vmatprep.subr.mxu0 0.0
        %987 = vmatpush1.msra.mxu0 %v955
        %988 = vmatprep.subr.mxu0 0.0
        %989 = vmatpush1.msra.mxu0 %v956
        %990 = vmatprep.subr.mxu0 0.0
        %991 = vmatpush1.msra.mxu0 %v957
        %992 = vmatprep.subr.mxu0 0.0
        %993 = vmatpush1.msra.mxu0 %v958
        %994 = vmatprep.subr.mxu0 0.0
        %995 = vmatpush1.msra.mxu0 %v959
        %996 = vmatprep.subr.mxu0 0.0
        %997 = vmatpush1.msra.mxu0 %v960
        %998 = vmatprep.subr.mxu0 0.0
        %999 = vmatpush1.msra.mxu0 %v961
        %1000 = vmatprep.subr.mxu0 0.0
        %1001 = vmatpush1.msra.mxu0 %v962
        %1002 = vmatprep.subr.mxu0 0.0
        %1003 = vmatpush1.msra.mxu0 0.0
        %1004 = vmatprep.subr.mxu0 0.0
        %1005 = vmatpush1.msra.mxu0 0.0
        %1006 = vmatprep.subr.mxu0 0.0
        %1007 = vmatpush1.msra.mxu0 0.0
        %1008 = vmatprep.subr.mxu0 0.0
        %1009 = vmatpush1.msra.mxu0 0.0
        %1010 = vmatprep.subr.mxu0 0.0
        %1011 = vmatpush1.msra.mxu0 0.0
        %1012 = vmatprep.subr.mxu0 0.0
        %1013 = vmatpush1.msra.mxu0 0.0
        %1014 = vmatprep.subr.mxu0 0.0
        %1015 = vmatpush1.msra.mxu0 0.0
        %1016 = vmatprep.subr.mxu0 0.0
        %1017 = vmatpush1.msra.mxu0 0.0
        %1018 = vmatprep.subr.mxu0 0.0
        %1019 = vmatpush1.msra.mxu0 0.0
        %1020 = vmatprep.subr.mxu0 0.0
        %1021 = vmatpush1.msra.mxu0 0.0
        %1022 = vmatprep.subr.mxu0 0.0
        %1023 = vmatpush1.msra.mxu0 0.0
        %1024 = vmatprep.subr.mxu0 0.0
        %1025 = vmatpush1.msra.mxu0 0.0
        %1026 = vmatprep.subr.mxu0 0.0
        %1027 = vmatpush1.msra.mxu0 0.0
        %1028 = vmatprep.subr.mxu0 0.0
        %1029 = vmatpush1.msra.mxu0 0.0
        %1030 = vmatprep.subr.mxu0 0.0
        %1031 = vmatpush1.msra.mxu0 0.0
        %1032 = vmatprep.subr.mxu0 0.0
        %1033 = vmatpush1.msra.mxu0 0.0
        %1034 = vmatprep.mubr.f32.mxu0 0.0
        %1035 = vmatmul.mubr.f32.gmra.mrb[0].mxu0 %v456
        %v1036 = vpop.f32.mrb[0].mxu0
        %v1037 = vadd.f32 %v968, %v1036
        %v1038 = vpop.f32.mrb[0].mxu0
        %1039 = vmatprep.mubr.f32.mxu0 0.0
        %1040 = vmatmul.mubr.f32.gmra.mrb[0].mxu0 %v458
        %v1041 = vpop.f32.mrb[0].mxu0
        %v1042 = vadd.f32 %v968, %v1041
        %v1043 = vpop.f32.mrb[0].mxu0
        %1044 = vdwg.mxu0
        %v1045 = vadd.f32 %v945, %v1037
        %v1046 = vadd.f32 %v946, %v1042
        %v1047 = vmax.f32 %v1045, 0.0
        %v1048 = vmax.f32 %v1046, 0.0
        %1049 = vst [vmem:[%s437] sm:$0xff] %v1047
        %1050 = vst [vmem:[%s437 + $0x8] sm:$0xff] %v1048
        %s1051 = sand.u32 %s237, 1
        %s1052 = scalar_lea.sflag [#allocation4], %s1051
        %s1053 = sand.u32 %s237, 1
        %s1054 = smul.addr %s1053, 16
        %s1055 = scalar_lea.vmem [#allocation11], %s1054
        // Predicated region
        $region73: #{tpu_custom_call.1} parent=51 // pred_check
          %p1056 = pneg %p247
        $region74: #{tpu_custom_call.1} parent=51 // pred_check_branch
          %1058 = sbr.rel (%p1056) target = $region76
        $region75: #{tpu_custom_call.1} parent=51 // pred_region
          %s1059 = smul.u32 2, %s34
          %s1061 = ssub.s32 256, 256
          %1062 = vsyncadd %s1052, %s1061
          %s1063 = smul.addr %s33, 2
          %s1064 = sadd.s32 %s1059, %s1063
          %s1065 = smul.addr %s1064, 128
          %s1066 = scalar_lea.hbm %s8, %s1065
          %s1067 = sshll.u32 %s1055, 4
          %s1068 = int_to_ptr.vmem [resolvable:$true] %s1067
          %1073 = dma.vmem_to_hbm [thread:$0]  %s1068, 256, %s1066, %s1052, 128, 128, 8
        $region76: #{tpu_custom_call.1} parent=51 // pred_fallthru
          _
      $region52: #{tpu_custom_call.1} parent=5 // pred_fallthru
        _
      %p1074 = scmp.le.s32.totalorder 2, %s24
      // Predicated region
      $region77: #{tpu_custom_call.1} parent=5 // pred_check
        %p1075 = pneg %p1074
      $region78: #{tpu_custom_call.1} parent=5 // pred_check_branch
        %1077 = sbr.rel (%p1075) target = $region80
      $region79: #{tpu_custom_call.1} parent=5 // pred_region
        %s1078 = ssub.s32 %s24, 2
        // Predicated region
        $region81: #{tpu_custom_call.1} parent=79 // pred_check
          %p1079 = pneg %p253
        $region82: #{tpu_custom_call.1} parent=79 // pred_check_branch
          %1081 = sbr.rel (%p1079) target = $region84
        $region83: #{tpu_custom_call.1} parent=79 // pred_region
          %s1082 = sand.u32 %s238, 1
          %s1083 = scalar_lea.sflag [#allocation4], %s1082
          %s1084 = sand.u32 %s238, 1
          %s1085 = smul.addr %s1084, 16
          %s1086 = scalar_lea.vmem [#allocation11], %s1085
          %1087 = dma.done %s1083, 256
        $region84: #{tpu_custom_call.1} parent=79 // pred_fallthru
          _
      $region80: #{tpu_custom_call.1} parent=5 // pred_fallthru
        _
    $region6: #{tpu_custom_call.1} parent=1 // loop_footer
      %s28 = sadd.s32 1, %s24
    $region7: #{tpu_custom_call.1} parent=1 // loop_footer_branch
      %23 = sbr.rel target = $region3
    $region8: #{tpu_custom_call.1} parent=1 // loop_exit
      _
    %1088 = vsyncpa [#allocation3], 1
    %s1089 = scalar_lea.sflag [#allocation3], 1
    %1090 = vsyncpa %s1089, 1
    %1091 = vsyncpa [#allocation6], 1
    %s1092 = scalar_lea.sflag [#allocation6], 1
    %1093 = vsyncpa %s1092, 1
    %1094 = vsyncpa [#allocation9], 1
    %1095 = vsyncpa [#allocation4], 1
    %s1096 = scalar_lea.sflag [#allocation4], 1
    %1097 = vsyncpa %s1096, 1

</llo_original>
